<compile_context>
chip_gen: v7x
topology: tpu7x:2x2x1
jax: 0.10.0
libtpu: 0.0.40
codegen_flags: <defaults>
</compile_context>

<pallas_src>
import jax
import jax.numpy as jnp
from jax.experimental import pallas as pl
from jax.experimental.pallas import tpu as pltpu

# ---- small, self-consistent configuration (mirrors module hyper-params) ----
N    = 2                      # batch
E    = 4                      # input_channels (spatial width of the "image")
H    = 8                      # hidden_channels
KT   = 5                      # kernel_size_temporal_conv
KP   = 6                      # kernel_size_pool
SP   = 3                      # stride_pool
T    = 20                     # time samples (input height)
T1   = T - KT + 1             # height after temporal conv        = 16
TP   = (T1 - KP) // SP + 1    # height after avg pool             = 4
LIN_IN = H * TP               # == `linear_layer` for this config = 32
NCLS = 4
EPS  = 1e-5

K_IN = KT * E                 # im2col contraction size = 20
NT1  = N * T1                 # 32
NTP  = N * TP                 # 8

# packed-parameter layout: every block starts on a sublane(8)-aligned row,
# column offset 0, so all in-kernel ref slices are aligned loads.
ROW_WEFF = 0                   # rows [0, 20)          cols [0, H)
ROW_BEFF = 24                  # row  24               cols [0, H)
ROW_BLIN = 32                  # row  32               cols [0, NCLS)
ROW_POOL = 40                  # rows [40, 48)         cols [0, NT1)
ROW_WLIN = 48                  # rows [48, 80)         cols [0, NCLS)
PACK_R   = ROW_WLIN + TP * H   # 80
PACK_C   = NT1                 # 32


def shallow_convnet_kernel(xcol_ref, prm_ref, out_ref):
    # xcol_ref: (N*T1, KT*E)   batch-stacked im2col of the input
    # prm_ref:  (PACK_R, PACK_C) packed, folded parameters (single DMA)
    # out_ref:  (N, NCLS)
    #
    # Slice the parameter ref directly (static, sublane-aligned offsets) so we
    # never materialize the whole slab as a value.
    weff = prm_ref[ROW_WEFF:ROW_WEFF + K_IN, 0:H]            # (20, 8)
    beff = prm_ref[ROW_BEFF:ROW_BEFF + 1, 0:H]               # (1, 8)
    blin = prm_ref[ROW_BLIN:ROW_BLIN + 1, 0:NCLS]            # (1, 4)
    pool = prm_ref[ROW_POOL:ROW_POOL + NTP, 0:NT1]           # (8, 32)
    wlin = prm_ref[ROW_WLIN:ROW_WLIN + TP * H, 0:NCLS]       # (32, 4)

    # ---- conv1 ∘ conv2 ∘ BatchNorm(eval) folded: one batched matmul + bias,
    #      then Square (all samples at once). ----
    z = jnp.dot(xcol_ref[...], weff,
                preferred_element_type=jnp.float32) + beff   # (N*T1, H)
    z = z * z

    # ---- AvgPool2d as one block-diagonal matmul (rows ordered p*N + n),
    #      then Log (EUP). ----
    pooled = jnp.dot(pool, z, preferred_element_type=jnp.float32)   # (N*TP, H)
    logp = jnp.log(pooled)

    # ---- Flatten + Linear: TP is static; batch-wide (N,H)x(H,NCLS) dots
    #      accumulated on the MXU; avoids an in-kernel sublane->lane reshape. ----
    acc = jnp.zeros((N, NCLS), jnp.float32)
    for p in range(TP):                                      # static, TP=4
        acc = acc + jnp.dot(logp[p * N:(p + 1) * N, :],
                            wlin[p * H:(p + 1) * H, :],
                            preferred_element_type=jnp.float32)

    out_ref[...] = acc + blin                                # single full store


def _fold_and_pack_params(params):
    """Fold conv1+conv2+BN(eval) into (Weff, beff) and pack everything into
    one VMEM-friendly parameter slab (done once per parameter set)."""
    (W1, b1, W2, b2, gamma, beta, rmean, rvar, Wlin, blin) = params
    W1s = W1[:, 0, :, 0]            # (H, KT)   [g, k]
    W2s = W2[:, :, 0, :]            # (H, H, E) [hout, g, e]
    scale = gamma / jnp.sqrt(rvar + EPS)
    shift = beta - rmean * scale

    hp = jax.lax.Precision.HIGHEST
    wfold = jnp.einsum('gk,hge->keh', W1s, W2s, precision=hp)        # (KT, E, H)
    weff = (wfold * scale[None, None, :]).reshape(K_IN, H)
    beff = (jnp.einsum('g,hge->h', b1, W2s, precision=hp) + b2) * scale + shift

    # Block-diagonal avg-pool matrix: row r = p*N + n, col c = n*T1 + t.
    r = jnp.arange(NTP)
    c = jnp.arange(NT1)
    p_r, n_r = r // N, r % N
    n_c, t_c = c // T1, c % T1
    pool = jnp.where((n_r[:, None] == n_c[None, :])
                     & (t_c[None, :] >= p_r[:, None] * SP)
                     & (t_c[None, :] < p_r[:, None] * SP + KP),
                     1.0 / KP, 0.0).astype(jnp.float32)              # (NTP, NT1)

    # PyTorch Flatten of (N, H, TP, 1) is channel-major: flat[h*TP + p].
    wlin = jnp.transpose(Wlin.reshape(NCLS, H, TP), (2, 1, 0)).reshape(TP * H, NCLS)

    packed = jnp.zeros((PACK_R, PACK_C), jnp.float32)
    packed = packed.at[ROW_WEFF:ROW_WEFF + K_IN, 0:H].set(weff)
    packed = packed.at[ROW_BEFF, 0:H].set(beff)
    packed = packed.at[ROW_BLIN, 0:NCLS].set(blin)
    packed = packed.at[ROW_POOL:ROW_POOL + NTP, 0:NT1].set(pool)
    packed = packed.at[ROW_WLIN:ROW_WLIN + TP * H, 0:NCLS].set(wlin)
    return packed


def shallow_convnet_forward(x_nchw, params):
    """JAX glue: im2col + parameter folding/packing, then one Pallas call."""
    x3 = x_nchw[:, 0, :, :]                                 # (N, T, E)
    xcol = jnp.concatenate([x3[:, k:k + T1, :] for k in range(KT)],
                           axis=-1).reshape(NT1, K_IN)      # (N*T1, KT*E)
    packed = _fold_and_pack_params(params)

    fwd = pl.pallas_call(
        shallow_convnet_kernel,
        out_shape=jax.ShapeDtypeStruct((N, NCLS), jnp.float32),
        in_specs=[pl.BlockSpec(memory_space=pltpu.MemorySpace.VMEM)] * 2,
        out_specs=pl.BlockSpec(memory_space=pltpu.MemorySpace.VMEM),
    )
    # TODO(synk): for real batches (N >> 2), add a batch grid with
    # dimension_semantics=("parallel",) and VMEM-sized im2col blocks so the
    # TensorCores split the batch and BlockSpec pipelines the DMAs.
    return fwd(xcol, packed)


def reference_forward(x_nchw, params):
    """Independent pure-JAX reference mirroring the PyTorch module (eval mode)."""
    (W1, b1, W2, b2, gamma, beta, rmean, rvar, Wlin, blin) = params
    xs = jnp.stack([x_nchw[:, 0, k:k + T1, :] for k in range(KT)], axis=-1)  # (N,T1,E,KT)
    out1 = jnp.einsum('ntek,hk->nhte', xs, W1[:, 0, :, 0]) \
        + b1[None, :, None, None]                                            # (N,H,T1,E)
    out2 = jnp.einsum('ngte,hge->nht', out1, W2[:, :, 0, :]) \
        + b2[None, :, None]                                                  # (N,H,T1)
    scale = gamma / jnp.sqrt(rvar + EPS)
    bias = beta - rmean * scale
    z = (out2 * scale[None, :, None] + bias[None, :, None]) ** 2
    pooled = jnp.stack([z[:, :, p * SP:p * SP + KP].mean(axis=2)
                        for p in range(TP)], axis=2)                         # (N,H,TP)
    flat = jnp.log(pooled).reshape(N, H * TP)
    return flat @ Wlin.T + blin[None, :]


def init_params(key):
    ks = jax.random.split(key, 10)
    W1    = 0.3 * jax.random.normal(ks[0], (H, 1, KT, 1), jnp.float32)
    b1    = 0.1 * jax.random.normal(ks[1], (H,), jnp.float32)
    W2    = 0.3 * jax.random.normal(ks[2], (H, H, 1, E), jnp.float32)
    b2    = 0.1 * jax.random.normal(ks[3], (H,), jnp.float32)
    gamma = 1.0 + 0.1 * jax.random.normal(ks[4], (H,), jnp.float32)
    beta  = 0.1 * jax.random.normal(ks[5], (H,), jnp.float32)
    rmean = 0.1 * jax.random.normal(ks[6], (H,), jnp.float32)
    rvar  = 1.0 + 0.1 * jnp.abs(jax.random.normal(ks[7], (H,), jnp.float32))
    Wlin  = 0.2 * jax.random.normal(ks[8], (NCLS, LIN_IN), jnp.float32)
    blin  = 0.1 * jax.random.normal(ks[9], (NCLS,), jnp.float32)
    return (W1, b1, W2, b2, gamma, beta, rmean, rvar, Wlin, blin)


if __name__ == "__main__":
    key = jax.random.PRNGKey(0)
    kx, kp = jax.random.split(key)
    x = jax.random.normal(kx, (N, 1, T, E), jnp.float32)   # PyTorch NCHW input
    params = init_params(kp)

    # TODO(synk): training-mode BatchNorm (batch statistics) not implemented;
    #             eval-mode running-stats normalization is folded into Weff/beff.
    y = shallow_convnet_forward(x, params)
    y = jax.block_until_ready(y)

    y_ref = jax.block_until_ready(reference_forward(x, params))
    assert y.shape == (N, NCLS)
    assert jnp.allclose(y, y_ref, rtol=1e-4, atol=1e-5), (y, y_ref)

    print("KERNEL_OK")
</pallas_src>

<mosaic_0001>
module attributes {stable_mosaic.version = 11 : i64} {
  func.func @shallow_convnet_kernel(%arg0: memref<32x20xf32, #tpu.memory_space<vmem>>, %arg1: memref<80x32xf32, #tpu.memory_space<vmem>>, %arg2: memref<2x4xf32, #tpu.memory_space<vmem>>) attributes {dimension_semantics = [], scalar_prefetch = 0 : i64, scratch_operands = 0 : i64, tpu.core_type = #tpu.core_type<tc>} {
    %c0 = arith.constant 0 : index
    %c0_0 = arith.constant 0 : index
    %0 = vector.load %arg1[%c0, %c0_0] : memref<80x32xf32, #tpu.memory_space<vmem>>, vector<20x8xf32>
    %c24 = arith.constant 24 : index
    %c0_1 = arith.constant 0 : index
    %1 = vector.load %arg1[%c24, %c0_1] : memref<80x32xf32, #tpu.memory_space<vmem>>, vector<1x8xf32>
    %c32 = arith.constant 32 : index
    %c0_2 = arith.constant 0 : index
    %2 = vector.load %arg1[%c32, %c0_2] : memref<80x32xf32, #tpu.memory_space<vmem>>, vector<1x4xf32>
    %c40 = arith.constant 40 : index
    %c0_3 = arith.constant 0 : index
    %3 = vector.load %arg1[%c40, %c0_3] : memref<80x32xf32, #tpu.memory_space<vmem>>, vector<8x32xf32>
    %c48 = arith.constant 48 : index
    %c0_4 = arith.constant 0 : index
    %4 = vector.load %arg1[%c48, %c0_4] : memref<80x32xf32, #tpu.memory_space<vmem>>, vector<32x4xf32>
    %c0_5 = arith.constant 0 : index
    %c0_6 = arith.constant 0 : index
    %5 = vector.load %arg0[%c0_5, %c0_6] : memref<32x20xf32, #tpu.memory_space<vmem>>, vector<32x20xf32>
    %cst = arith.constant dense<0.000000e+00> : vector<32x8xf32>
    %6 = tpu.matmul %5, %0, %cst {dimension_numbers = #tpu.dot_dimension_numbers<[1], [0], [0], [1], [0, 0, 1, 1], [], []>} : vector<32x20xf32>, vector<20x8xf32>, vector<32x8xf32> -> vector<32x8xf32>
    %7 = vector.broadcast %1 : vector<1x8xf32> to vector<32x8xf32>
    %8 = arith.addf %6, %7 : vector<32x8xf32>
    %9 = arith.mulf %8, %8 : vector<32x8xf32>
    %cst_7 = arith.constant dense<0.000000e+00> : vector<8x8xf32>
    %10 = tpu.matmul %3, %9, %cst_7 {dimension_numbers = #tpu.dot_dimension_numbers<[1], [0], [0], [1], [0, 0, 1, 1], [], []>} : vector<8x32xf32>, vector<32x8xf32>, vector<8x8xf32> -> vector<8x8xf32>
    %11 = math.log %10 : vector<8x8xf32>
    %cst_8 = arith.constant 0.000000e+00 : f32
    %12 = vector.broadcast %cst_8 : f32 to vector<2x4xf32>
    %13 = vector.extract_strided_slice %11 {offsets = [0, 0], sizes = [2, 8], strides = [1, 1]} : vector<8x8xf32> to vector<2x8xf32>
    %14 = vector.extract_strided_slice %4 {offsets = [0, 0], sizes = [8, 4], strides = [1, 1]} : vector<32x4xf32> to vector<8x4xf32>
    %cst_9 = arith.constant dense<0.000000e+00> : vector<2x4xf32>
    %15 = tpu.matmul %13, %14, %cst_9 {dimension_numbers = #tpu.dot_dimension_numbers<[1], [0], [0], [1], [0, 0, 1, 1], [], []>} : vector<2x8xf32>, vector<8x4xf32>, vector<2x4xf32> -> vector<2x4xf32>
    %16 = arith.addf %12, %15 : vector<2x4xf32>
    %17 = vector.extract_strided_slice %11 {offsets = [2, 0], sizes = [2, 8], strides = [1, 1]} : vector<8x8xf32> to vector<2x8xf32>
    %18 = vector.extract_strided_slice %4 {offsets = [8, 0], sizes = [8, 4], strides = [1, 1]} : vector<32x4xf32> to vector<8x4xf32>
    %cst_10 = arith.constant dense<0.000000e+00> : vector<2x4xf32>
    %19 = tpu.matmul %17, %18, %cst_10 {dimension_numbers = #tpu.dot_dimension_numbers<[1], [0], [0], [1], [0, 0, 1, 1], [], []>} : vector<2x8xf32>, vector<8x4xf32>, vector<2x4xf32> -> vector<2x4xf32>
    %20 = arith.addf %16, %19 : vector<2x4xf32>
    %21 = vector.extract_strided_slice %11 {offsets = [4, 0], sizes = [2, 8], strides = [1, 1]} : vector<8x8xf32> to vector<2x8xf32>
    %22 = vector.extract_strided_slice %4 {offsets = [16, 0], sizes = [8, 4], strides = [1, 1]} : vector<32x4xf32> to vector<8x4xf32>
    %cst_11 = arith.constant dense<0.000000e+00> : vector<2x4xf32>
    %23 = tpu.matmul %21, %22, %cst_11 {dimension_numbers = #tpu.dot_dimension_numbers<[1], [0], [0], [1], [0, 0, 1, 1], [], []>} : vector<2x8xf32>, vector<8x4xf32>, vector<2x4xf32> -> vector<2x4xf32>
    %24 = arith.addf %20, %23 : vector<2x4xf32>
    %25 = vector.extract_strided_slice %11 {offsets = [6, 0], sizes = [2, 8], strides = [1, 1]} : vector<8x8xf32> to vector<2x8xf32>
    %26 = vector.extract_strided_slice %4 {offsets = [24, 0], sizes = [8, 4], strides = [1, 1]} : vector<32x4xf32> to vector<8x4xf32>
    %cst_12 = arith.constant dense<0.000000e+00> : vector<2x4xf32>
    %27 = tpu.matmul %25, %26, %cst_12 {dimension_numbers = #tpu.dot_dimension_numbers<[1], [0], [0], [1], [0, 0, 1, 1], [], []>} : vector<2x8xf32>, vector<8x4xf32>, vector<2x4xf32> -> vector<2x4xf32>
    %28 = arith.addf %24, %27 : vector<2x4xf32>
    %29 = vector.broadcast %2 : vector<1x4xf32> to vector<2x4xf32>
    %30 = arith.addf %28, %29 : vector<2x4xf32>
    %c0_13 = arith.constant 0 : index
    %c0_14 = arith.constant 0 : index
    %31 = vector.load %arg2[%c0_13, %c0_14] : memref<2x4xf32, #tpu.memory_space<vmem>>, vector<2x4xf32>
    tpu.vector_store %arg2[%c0_13, %c0_14], %30 {strides = array<i32>} : memref<2x4xf32, #tpu.memory_space<vmem>>, vector<2x4xf32>,
    return
  }
}

</mosaic_0001>

<llo_original>
// kernel: tpu_custom_call.1
$region0: #{tpu_custom_call.1}
  #allocation0 [shape = 'u32[]', space=smem, size = 0x4, offset = 0x4, fixed_abs, tag = 'smem constant byte address 0x4 - core index']
  #allocation1 [shape = 'u32[144,128]{1,0:T(1,128)}', space=vmem, size = 0x12000, scoped, tag = 'internal scratch']
  %s0 = inlined_call_operand.vmem [shape: f32[32,20], index: 0, kind: input, shape index: {}]
  %s1 = inlined_call_operand.vmem [shape: f32[80,32], index: 1, kind: input, shape index: {}]
  %s2 = inlined_call_operand.hbm [shape: f32[2,4], index: 2, kind: output, shape index: {}]
  %s3 = sld [smem:[#allocation0]]
  $region18: #{tpu_custom_call.1} parent=0
    _
  %s5 = ssub.s32 1, %s3
  %s6 = scalar_select 0, %s5, %s3
  $region1: #{tpu_custom_call.1} parent=0
    #allocation2 [shape = 'u8[1024]{0}', space=vmem, size = 0x400, scoped, tag = 'output window, operand 0, single buffered']
    #allocation3 [shape = 's32[1]{0}', space=sflag, size = 0x4, scoped, tag = 'scoped memory for tpu_custom_call.1']
    %7 = vsyncpa [#allocation3], 0
    // Predicated region
    $region2: #{tpu_custom_call.1} parent=1 // pred_check
      _
    $region3: #{tpu_custom_call.1} parent=1 // pred_check_branch
      %9 = sbr.rel (0) target = $region5
    $region4: #{tpu_custom_call.1} parent=1 // pred_region
      _
    $region5: #{tpu_custom_call.1} parent=1 // pred_fallthru
      _
    // Predicated region
    $region6: #{tpu_custom_call.1} parent=1 // pred_check
      _
    $region7: #{tpu_custom_call.1} parent=1 // pred_check_branch
      %11 = sbr.rel (0) target = $region9
    $region8: #{tpu_custom_call.1} parent=1 // pred_region
      _
    $region9: #{tpu_custom_call.1} parent=1 // pred_fallthru
      _
    %v12 = vld [vmem:[%s1] sm:$0xff]
    %v13 = vld [vmem:[%s1 + $0x8] sm:$0xff]
    %v14 = vld [vmem:[%s1 + $0x10] sm:$0xf]
    %v15 = vld [vmem:[%s1 + $0x18] sm:$0x1]
    %v16 = vld [vmem:[%s1 + $0x20] sm:$0x1]
    %v17 = vld [vmem:[%s1 + $0x28] sm:$0xff]
    %v18 = vld [vmem:[%s1 + $0x30] sm:$0xff]
    %v19 = vld [vmem:[%s1 + $0x38] sm:$0xff]
    %v20 = vld [vmem:[%s1 + $0x40] sm:$0xff]
    %v21 = vld [vmem:[%s1 + $0x48] sm:$0xff]
    %v22 = vld [vmem:[%s0] sm:$0xff]
    %v23 = vld [vmem:[%s0 + $0x8] sm:$0xff]
    %v24 = vld [vmem:[%s0 + $0x10] sm:$0xff]
    %v25 = vld [vmem:[%s0 + $0x18] sm:$0xff]
    %v26 = vlaneseq
    %v27 = vshrl.u32 %v26, 7
    %v28 = vsub.s32 0, %v27
    %v29 = vrot.slane %v15, %v28
    %vm30 = vcmask 162816
    %v32 = vsel %vm30, %v22, 0
    %v35 = vsel %vm30, %v23, 0
    %v38 = vsel %vm30, %v24, 0
    %v41 = vsel %vm30, %v25, 0
    %vm43 = vcmask 1043456
    %v45 = vsel %vm43, %v14, 0
    %47 = vmatprep.subr.mxu0 0.0
    %48 = vmatpush1.msra.mxu0 %v12
    %49 = vmatprep.subr.mxu0 0.0
    %50 = vmatpush1.msra.mxu0 %v13
    %51 = vmatprep.subr.mxu0 0.0
    %52 = vmatpush1.msra.mxu0 %v45
    %53 = vmatprep.subr.mxu0 0.0
    %54 = vmatpush1.msra.mxu0 0.0
    %55 = vmatprep.subr.mxu0 0.0
    %56 = vmatpush1.msra.mxu0 0.0
    %57 = vmatprep.subr.mxu0 0.0
    %58 = vmatpush1.msra.mxu0 0.0
    %59 = vmatprep.subr.mxu0 0.0
    %60 = vmatpush1.msra.mxu0 0.0
    %61 = vmatprep.subr.mxu0 0.0
    %62 = vmatpush1.msra.mxu0 0.0
    %63 = vmatprep.subr.mxu0 0.0
    %64 = vmatpush1.msra.mxu0 0.0
    %65 = vmatprep.subr.mxu0 0.0
    %66 = vmatpush1.msra.mxu0 0.0
    %67 = vmatprep.subr.mxu0 0.0
    %68 = vmatpush1.msra.mxu0 0.0
    %69 = vmatprep.subr.mxu0 0.0
    %70 = vmatpush1.msra.mxu0 0.0
    %71 = vmatprep.subr.mxu0 0.0
    %72 = vmatpush1.msra.mxu0 0.0
    %73 = vmatprep.subr.mxu0 0.0
    %74 = vmatpush1.msra.mxu0 0.0
    %75 = vmatprep.subr.mxu0 0.0
    %76 = vmatpush1.msra.mxu0 0.0
    %77 = vmatprep.subr.mxu0 0.0
    %78 = vmatpush1.msra.mxu0 0.0
    %79 = vmatprep.subr.mxu0 0.0
    %80 = vmatpush1.msra.mxu0 0.0
    %81 = vmatprep.subr.mxu0 0.0
    %82 = vmatpush1.msra.mxu0 0.0
    %83 = vmatprep.subr.mxu0 0.0
    %84 = vmatpush1.msra.mxu0 0.0
    %85 = vmatprep.subr.mxu0 0.0
    %86 = vmatpush1.msra.mxu0 0.0
    %87 = vmatprep.subr.mxu0 0.0
    %88 = vmatpush1.msra.mxu0 0.0
    %89 = vmatprep.subr.mxu0 0.0
    %90 = vmatpush1.msra.mxu0 0.0
    %91 = vmatprep.subr.mxu0 0.0
    %92 = vmatpush1.msra.mxu0 0.0
    %93 = vmatprep.subr.mxu0 0.0
    %94 = vmatpush1.msra.mxu0 0.0
    %95 = vmatprep.subr.mxu0 0.0
    %96 = vmatpush1.msra.mxu0 0.0
    %97 = vmatprep.subr.mxu0 0.0
    %98 = vmatpush1.msra.mxu0 0.0
    %99 = vmatprep.subr.mxu0 0.0
    %100 = vmatpush1.msra.mxu0 0.0
    %101 = vmatprep.subr.mxu0 0.0
    %102 = vmatpush1.msra.mxu0 0.0
    %103 = vmatprep.subr.mxu0 0.0
    %104 = vmatpush1.msra.mxu0 0.0
    %105 = vmatprep.subr.mxu0 0.0
    %106 = vmatpush1.msra.mxu0 0.0
    %107 = vmatprep.subr.mxu0 0.0
    %108 = vmatpush1.msra.mxu0 0.0
    %109 = vmatprep.subr.mxu0 0.0
    %110 = vmatpush1.msra.mxu0 0.0
    %111 = vmatprep.mubr.f32.mxu0 0.0
    %112 = vmatmul.mubr.f32.gmra.mrb[0].mxu0 %v32
    %v113 = vpop.f32.mrb[0].mxu0
    %v114 = vadd.f32 %v29, %v113
    %v115 = vpop.f32.mrb[0].mxu0
    %116 = vmatprep.mubr.f32.mxu0 0.0
    %117 = vmatmul.mubr.f32.gmra.mrb[0].mxu0 %v35
    %v118 = vpop.f32.mrb[0].mxu0
    %v119 = vadd.f32 %v29, %v118
    %v120 = vpop.f32.mrb[0].mxu0
    %121 = vmatprep.mubr.f32.mxu0 0.0
    %122 = vmatmul.mubr.f32.gmra.mrb[0].mxu0 %v38
    %v123 = vpop.f32.mrb[0].mxu0
    %v124 = vadd.f32 %v29, %v123
    %v125 = vpop.f32.mrb[0].mxu0
    %126 = vmatprep.mubr.f32.mxu0 0.0
    %127 = vmatmul.mubr.f32.gmra.mrb[0].mxu0 %v41
    %v128 = vpop.f32.mrb[0].mxu0
    %v129 = vadd.f32 %v29, %v128
    %v130 = vpop.f32.mrb[0].mxu0
    %131 = vdwg.mxu0
    %v132 = vmul.f32 %v114, %v114
    %v133 = vmul.f32 %v119, %v119
    %v134 = vmul.f32 %v124, %v124
    %v135 = vmul.f32 %v129, %v129
    %vm136 = vcmask 261120
    %v138 = vsel %vm136, %v17, 0
    %140 = vmatprep.subr.mxu0 0.0
    %141 = vmatpush1.msra.mxu0 %v132
    %142 = vmatprep.subr.mxu0 0.0
    %143 = vmatpush1.msra.mxu0 %v133
    %144 = vmatprep.subr.mxu0 0.0
    %145 = vmatpush1.msra.mxu0 %v134
    %146 = vmatprep.subr.mxu0 0.0
    %147 = vmatpush1.msra.mxu0 %v135
    %148 = vmatprep.subr.mxu0 0.0
    %149 = vmatpush1.msra.mxu0 0.0
    %150 = vmatprep.subr.mxu0 0.0
    %151 = vmatpush1.msra.mxu0 0.0
    %152 = vmatprep.subr.mxu0 0.0
    %153 = vmatpush1.msra.mxu0 0.0
    %154 = vmatprep.subr.mxu0 0.0
    %155 = vmatpush1.msra.mxu0 0.0
    %156 = vmatprep.subr.mxu0 0.0
    %157 = vmatpush1.msra.mxu0 0.0
    %158 = vmatprep.subr.mxu0 0.0
    %159 = vmatpush1.msra.mxu0 0.0
    %160 = vmatprep.subr.mxu0 0.0
    %161 = vmatpush1.msra.mxu0 0.0
    %162 = vmatprep.subr.mxu0 0.0
    %163 = vmatpush1.msra.mxu0 0.0
    %164 = vmatprep.subr.mxu0 0.0
    %165 = vmatpush1.msra.mxu0 0.0
    %166 = vmatprep.subr.mxu0 0.0
    %167 = vmatpush1.msra.mxu0 0.0
    %168 = vmatprep.subr.mxu0 0.0
    %169 = vmatpush1.msra.mxu0 0.0
    %170 = vmatprep.subr.mxu0 0.0
    %171 = vmatpush1.msra.mxu0 0.0
    %172 = vmatprep.subr.mxu0 0.0
    %173 = vmatpush1.msra.mxu0 0.0
    %174 = vmatprep.subr.mxu0 0.0
    %175 = vmatpush1.msra.mxu0 0.0
    %176 = vmatprep.subr.mxu0 0.0
    %177 = vmatpush1.msra.mxu0 0.0
    %178 = vmatprep.subr.mxu0 0.0
    %179 = vmatpush1.msra.mxu0 0.0
    %180 = vmatprep.subr.mxu0 0.0
    %181 = vmatpush1.msra.mxu0 0.0
    %182 = vmatprep.subr.mxu0 0.0
    %183 = vmatpush1.msra.mxu0 0.0
    %184 = vmatprep.subr.mxu0 0.0
    %185 = vmatpush1.msra.mxu0 0.0
    %186 = vmatprep.subr.mxu0 0.0
    %187 = vmatpush1.msra.mxu0 0.0
    %188 = vmatprep.subr.mxu0 0.0
    %189 = vmatpush1.msra.mxu0 0.0
    %190 = vmatprep.subr.mxu0 0.0
    %191 = vmatpush1.msra.mxu0 0.0
    %192 = vmatprep.subr.mxu0 0.0
    %193 = vmatpush1.msra.mxu0 0.0
    %194 = vmatprep.subr.mxu0 0.0
    %195 = vmatpush1.msra.mxu0 0.0
    %196 = vmatprep.subr.mxu0 0.0
    %197 = vmatpush1.msra.mxu0 0.0
    %198 = vmatprep.subr.mxu0 0.0
    %199 = vmatpush1.msra.mxu0 0.0
    %200 = vmatprep.subr.mxu0 0.0
    %201 = vmatpush1.msra.mxu0 0.0
    %202 = vmatprep.subr.mxu0 0.0
    %203 = vmatpush1.msra.mxu0 0.0
    %204 = vmatprep.mubr.f32.mxu0 0.0
    %205 = vmatmul.mubr.f32.gmra.mrb[0].mxu0 %v138
    %v206 = vpop.f32.mrb[0].mxu0
    %v207 = vadd.f32 0.0, %v206
    %v208 = vpop.f32.mrb[0].mxu0
    %209 = vdwg.mxu0
    %v210 = vlog2.pop %v207
    %v211 = vmul.f32 %v210, 0.6931472
    %v213 = vrot.slane %v211, 2
    %vm214 = vcmask 64512
    %v215 = vsel %vm214, %v213, 0
    %217 = vmatprep.subr.mxu0 0.0
    %218 = vmatpush1.msra.mxu0 %v19
    %219 = vmatprep.subr.mxu0 0.0
    %220 = vmatpush1.msra.mxu0 0.0
    %221 = vmatprep.subr.mxu0 0.0
    %222 = vmatpush1.msra.mxu0 0.0
    %223 = vmatprep.subr.mxu0 0.0
    %224 = vmatpush1.msra.mxu0 0.0
    %225 = vmatprep.subr.mxu0 0.0
    %226 = vmatpush1.msra.mxu0 0.0
    %227 = vmatprep.subr.mxu0 0.0
    %228 = vmatpush1.msra.mxu0 0.0
    %229 = vmatprep.subr.mxu0 0.0
    %230 = vmatpush1.msra.mxu0 0.0
    %231 = vmatprep.subr.mxu0 0.0
    %232 = vmatpush1.msra.mxu0 0.0
    %233 = vmatprep.subr.mxu0 0.0
    %234 = vmatpush1.msra.mxu0 0.0
    %235 = vmatprep.subr.mxu0 0.0
    %236 = vmatpush1.msra.mxu0 0.0
    %237 = vmatprep.subr.mxu0 0.0
    %238 = vmatpush1.msra.mxu0 0.0
    %239 = vmatprep.subr.mxu0 0.0
    %240 = vmatpush1.msra.mxu0 0.0
    %241 = vmatprep.subr.mxu0 0.0
    %242 = vmatpush1.msra.mxu0 0.0
    %243 = vmatprep.subr.mxu0 0.0
    %244 = vmatpush1.msra.mxu0 0.0
    %245 = vmatprep.subr.mxu0 0.0
    %246 = vmatpush1.msra.mxu0 0.0
    %247 = vmatprep.subr.mxu0 0.0
    %248 = vmatpush1.msra.mxu0 0.0
    %249 = vmatprep.subr.mxu0 0.0
    %250 = vmatpush1.msra.mxu0 0.0
    %251 = vmatprep.subr.mxu0 0.0
    %252 = vmatpush1.msra.mxu0 0.0
    %253 = vmatprep.subr.mxu0 0.0
    %254 = vmatpush1.msra.mxu0 0.0
    %255 = vmatprep.subr.mxu0 0.0
    %256 = vmatpush1.msra.mxu0 0.0
    %257 = vmatprep.subr.mxu0 0.0
    %258 = vmatpush1.msra.mxu0 0.0
    %259 = vmatprep.subr.mxu0 0.0
    %260 = vmatpush1.msra.mxu0 0.0
    %261 = vmatprep.subr.mxu0 0.0
    %262 = vmatpush1.msra.mxu0 0.0
    %263 = vmatprep.subr.mxu0 0.0
    %264 = vmatpush1.msra.mxu0 0.0
    %265 = vmatprep.subr.mxu0 0.0
    %266 = vmatpush1.msra.mxu0 0.0
    %267 = vmatprep.subr.mxu0 0.0
    %268 = vmatpush1.msra.mxu0 0.0
    %269 = vmatprep.subr.mxu0 0.0
    %270 = vmatpush1.msra.mxu0 0.0
    %271 = vmatprep.subr.mxu0 0.0
    %272 = vmatpush1.msra.mxu0 0.0
    %273 = vmatprep.subr.mxu0 0.0
    %274 = vmatpush1.msra.mxu0 0.0
    %275 = vmatprep.subr.mxu0 0.0
    %276 = vmatpush1.msra.mxu0 0.0
    %277 = vmatprep.subr.mxu0 0.0
    %278 = vmatpush1.msra.mxu0 0.0
    %279 = vmatprep.subr.mxu0 0.0
    %280 = vmatpush1.msra.mxu0 0.0
    %281 = vmatprep.mubr.f32.mxu0 0.0
    %282 = vmatmul.mubr.f32.gmra.mrb[0].mxu0 %v215
    %v283 = vpop.f32.mrb[0].mxu0
    %v284 = vadd.f32 0.0, %v283
    %v285 = vpop.f32.mrb[0].mxu0
    %286 = vdwg.mxu0
    %v287 = vsel %vm214, %v211, 0
    %289 = vmatprep.subr.mxu0 0.0
    %290 = vmatpush1.msra.mxu0 %v18
    %291 = vmatprep.subr.mxu0 0.0
    %292 = vmatpush1.msra.mxu0 0.0
    %293 = vmatprep.subr.mxu0 0.0
    %294 = vmatpush1.msra.mxu0 0.0
    %295 = vmatprep.subr.mxu0 0.0
    %296 = vmatpush1.msra.mxu0 0.0
    %297 = vmatprep.subr.mxu0 0.0
    %298 = vmatpush1.msra.mxu0 0.0
    %299 = vmatprep.subr.mxu0 0.0
    %300 = vmatpush1.msra.mxu0 0.0
    %301 = vmatprep.subr.mxu0 0.0
    %302 = vmatpush1.msra.mxu0 0.0
    %303 = vmatprep.subr.mxu0 0.0
    %304 = vmatpush1.msra.mxu0 0.0
    %305 = vmatprep.subr.mxu0 0.0
    %306 = vmatpush1.msra.mxu0 0.0
    %307 = vmatprep.subr.mxu0 0.0
    %308 = vmatpush1.msra.mxu0 0.0
    %309 = vmatprep.subr.mxu0 0.0
    %310 = vmatpush1.msra.mxu0 0.0
    %311 = vmatprep.subr.mxu0 0.0
    %312 = vmatpush1.msra.mxu0 0.0
    %313 = vmatprep.subr.mxu0 0.0
    %314 = vmatpush1.msra.mxu0 0.0
    %315 = vmatprep.subr.mxu0 0.0
    %316 = vmatpush1.msra.mxu0 0.0
    %317 = vmatprep.subr.mxu0 0.0
    %318 = vmatpush1.msra.mxu0 0.0
    %319 = vmatprep.subr.mxu0 0.0
    %320 = vmatpush1.msra.mxu0 0.0
    %321 = vmatprep.subr.mxu0 0.0
    %322 = vmatpush1.msra.mxu0 0.0
    %323 = vmatprep.subr.mxu0 0.0
    %324 = vmatpush1.msra.mxu0 0.0
    %325 = vmatprep.subr.mxu0 0.0
    %326 = vmatpush1.msra.mxu0 0.0
    %327 = vmatprep.subr.mxu0 0.0
    %328 = vmatpush1.msra.mxu0 0.0
    %329 = vmatprep.subr.mxu0 0.0
    %330 = vmatpush1.msra.mxu0 0.0
    %331 = vmatprep.subr.mxu0 0.0
    %332 = vmatpush1.msra.mxu0 0.0
    %333 = vmatprep.subr.mxu0 0.0
    %334 = vmatpush1.msra.mxu0 0.0
    %335 = vmatprep.subr.mxu0 0.0
    %336 = vmatpush1.msra.mxu0 0.0
    %337 = vmatprep.subr.mxu0 0.0
    %338 = vmatpush1.msra.mxu0 0.0
    %339 = vmatprep.subr.mxu0 0.0
    %340 = vmatpush1.msra.mxu0 0.0
    %341 = vmatprep.subr.mxu0 0.0
    %342 = vmatpush1.msra.mxu0 0.0
    %343 = vmatprep.subr.mxu0 0.0
    %344 = vmatpush1.msra.mxu0 0.0
    %345 = vmatprep.subr.mxu0 0.0
    %346 = vmatpush1.msra.mxu0 0.0
    %347 = vmatprep.subr.mxu0 0.0
    %348 = vmatpush1.msra.mxu0 0.0
    %349 = vmatprep.subr.mxu0 0.0
    %350 = vmatpush1.msra.mxu0 0.0
    %351 = vmatprep.subr.mxu0 0.0
    %352 = vmatpush1.msra.mxu0 0.0
    %353 = vmatprep.mubr.f32.mxu0 0.0
    %354 = vmatmul.mubr.f32.gmra.mrb[0].mxu0 %v287
    %v355 = vpop.f32.mrb[0].mxu0
    %v356 = vadd.f32 %v284, %v355
    %v357 = vpop.f32.mrb[0].mxu0
    %358 = vdwg.mxu0
    %v359 = vrot.slane %v211, 4
    %v360 = vsel %vm214, %v359, 0
    %362 = vmatprep.subr.mxu0 0.0
    %363 = vmatpush1.msra.mxu0 %v20
    %364 = vmatprep.subr.mxu0 0.0
    %365 = vmatpush1.msra.mxu0 0.0
    %366 = vmatprep.subr.mxu0 0.0
    %367 = vmatpush1.msra.mxu0 0.0
    %368 = vmatprep.subr.mxu0 0.0
    %369 = vmatpush1.msra.mxu0 0.0
    %370 = vmatprep.subr.mxu0 0.0
    %371 = vmatpush1.msra.mxu0 0.0
    %372 = vmatprep.subr.mxu0 0.0
    %373 = vmatpush1.msra.mxu0 0.0
    %374 = vmatprep.subr.mxu0 0.0
    %375 = vmatpush1.msra.mxu0 0.0
    %376 = vmatprep.subr.mxu0 0.0
    %377 = vmatpush1.msra.mxu0 0.0
    %378 = vmatprep.subr.mxu0 0.0
    %379 = vmatpush1.msra.mxu0 0.0
    %380 = vmatprep.subr.mxu0 0.0
    %381 = vmatpush1.msra.mxu0 0.0
    %382 = vmatprep.subr.mxu0 0.0
    %383 = vmatpush1.msra.mxu0 0.0
    %384 = vmatprep.subr.mxu0 0.0
    %385 = vmatpush1.msra.mxu0 0.0
    %386 = vmatprep.subr.mxu0 0.0
    %387 = vmatpush1.msra.mxu0 0.0
    %388 = vmatprep.subr.mxu0 0.0
    %389 = vmatpush1.msra.mxu0 0.0
    %390 = vmatprep.subr.mxu0 0.0
    %391 = vmatpush1.msra.mxu0 0.0
    %392 = vmatprep.subr.mxu0 0.0
    %393 = vmatpush1.msra.mxu0 0.0
    %394 = vmatprep.subr.mxu0 0.0
    %395 = vmatpush1.msra.mxu0 0.0
    %396 = vmatprep.subr.mxu0 0.0
    %397 = vmatpush1.msra.mxu0 0.0
    %398 = vmatprep.subr.mxu0 0.0
    %399 = vmatpush1.msra.mxu0 0.0
    %400 = vmatprep.subr.mxu0 0.0
    %401 = vmatpush1.msra.mxu0 0.0
    %402 = vmatprep.subr.mxu0 0.0
    %403 = vmatpush1.msra.mxu0 0.0
    %404 = vmatprep.subr.mxu0 0.0
    %405 = vmatpush1.msra.mxu0 0.0
    %406 = vmatprep.subr.mxu0 0.0
    %407 = vmatpush1.msra.mxu0 0.0
    %408 = vmatprep.subr.mxu0 0.0
    %409 = vmatpush1.msra.mxu0 0.0
    %410 = vmatprep.subr.mxu0 0.0
    %411 = vmatpush1.msra.mxu0 0.0
    %412 = vmatprep.subr.mxu0 0.0
    %413 = vmatpush1.msra.mxu0 0.0
    %414 = vmatprep.subr.mxu0 0.0
    %415 = vmatpush1.msra.mxu0 0.0
    %416 = vmatprep.subr.mxu0 0.0
    %417 = vmatpush1.msra.mxu0 0.0
    %418 = vmatprep.subr.mxu0 0.0
    %419 = vmatpush1.msra.mxu0 0.0
    %420 = vmatprep.subr.mxu0 0.0
    %421 = vmatpush1.msra.mxu0 0.0
    %422 = vmatprep.subr.mxu0 0.0
    %423 = vmatpush1.msra.mxu0 0.0
    %424 = vmatprep.subr.mxu0 0.0
    %425 = vmatpush1.msra.mxu0 0.0
    %426 = vmatprep.mubr.f32.mxu0 0.0
    %427 = vmatmul.mubr.f32.gmra.mrb[0].mxu0 %v360
    %v428 = vpop.f32.mrb[0].mxu0
    %v429 = vadd.f32 0.0, %v428
    %v430 = vpop.f32.mrb[0].mxu0
    %431 = vdwg.mxu0
    %v432 = vadd.f32 %v356, %v429
    %v433 = vrot.slane %v211, 6
    %v434 = vsel %vm214, %v433, 0
    %436 = vmatprep.subr.mxu0 0.0
    %437 = vmatpush1.msra.mxu0 %v21
    %438 = vmatprep.subr.mxu0 0.0
    %439 = vmatpush1.msra.mxu0 0.0
    %440 = vmatprep.subr.mxu0 0.0
    %441 = vmatpush1.msra.mxu0 0.0
    %442 = vmatprep.subr.mxu0 0.0
    %443 = vmatpush1.msra.mxu0 0.0
    %444 = vmatprep.subr.mxu0 0.0
    %445 = vmatpush1.msra.mxu0 0.0
    %446 = vmatprep.subr.mxu0 0.0
    %447 = vmatpush1.msra.mxu0 0.0
    %448 = vmatprep.subr.mxu0 0.0
    %449 = vmatpush1.msra.mxu0 0.0
    %450 = vmatprep.subr.mxu0 0.0
    %451 = vmatpush1.msra.mxu0 0.0
    %452 = vmatprep.subr.mxu0 0.0
    %453 = vmatpush1.msra.mxu0 0.0
    %454 = vmatprep.subr.mxu0 0.0
    %455 = vmatpush1.msra.mxu0 0.0
    %456 = vmatprep.subr.mxu0 0.0
    %457 = vmatpush1.msra.mxu0 0.0
    %458 = vmatprep.subr.mxu0 0.0
    %459 = vmatpush1.msra.mxu0 0.0
    %460 = vmatprep.subr.mxu0 0.0
    %461 = vmatpush1.msra.mxu0 0.0
    %462 = vmatprep.subr.mxu0 0.0
    %463 = vmatpush1.msra.mxu0 0.0
    %464 = vmatprep.subr.mxu0 0.0
    %465 = vmatpush1.msra.mxu0 0.0
    %466 = vmatprep.subr.mxu0 0.0
    %467 = vmatpush1.msra.mxu0 0.0
    %468 = vmatprep.subr.mxu0 0.0
    %469 = vmatpush1.msra.mxu0 0.0
    %470 = vmatprep.subr.mxu0 0.0
    %471 = vmatpush1.msra.mxu0 0.0
    %472 = vmatprep.subr.mxu0 0.0
    %473 = vmatpush1.msra.mxu0 0.0
    %474 = vmatprep.subr.mxu0 0.0
    %475 = vmatpush1.msra.mxu0 0.0
    %476 = vmatprep.subr.mxu0 0.0
    %477 = vmatpush1.msra.mxu0 0.0
    %478 = vmatprep.subr.mxu0 0.0
    %479 = vmatpush1.msra.mxu0 0.0
    %480 = vmatprep.subr.mxu0 0.0
    %481 = vmatpush1.msra.mxu0 0.0
    %482 = vmatprep.subr.mxu0 0.0
    %483 = vmatpush1.msra.mxu0 0.0
    %484 = vmatprep.subr.mxu0 0.0
    %485 = vmatpush1.msra.mxu0 0.0
    %486 = vmatprep.subr.mxu0 0.0
    %487 = vmatpush1.msra.mxu0 0.0
    %488 = vmatprep.subr.mxu0 0.0
    %489 = vmatpush1.msra.mxu0 0.0
    %490 = vmatprep.subr.mxu0 0.0
    %491 = vmatpush1.msra.mxu0 0.0
    %492 = vmatprep.subr.mxu0 0.0
    %493 = vmatpush1.msra.mxu0 0.0
    %494 = vmatprep.subr.mxu0 0.0
    %495 = vmatpush1.msra.mxu0 0.0
    %496 = vmatprep.subr.mxu0 0.0
    %497 = vmatpush1.msra.mxu0 0.0
    %498 = vmatprep.subr.mxu0 0.0
    %499 = vmatpush1.msra.mxu0 0.0
    %500 = vmatprep.mubr.f32.mxu0 0.0
    %501 = vmatmul.mubr.f32.gmra.mrb[0].mxu0 %v434
    %v502 = vpop.f32.mrb[0].mxu0
    %v503 = vadd.f32 0.0, %v502
    %v504 = vpop.f32.mrb[0].mxu0
    %505 = vdwg.mxu0
    %v506 = vadd.f32 %v432, %v503
    %v507 = vlaneseq
    %v508 = vshrl.u32 %v507, 7
    %v509 = vsub.s32 0, %v508
    %v510 = vrot.slane %v16, %v509
    %v511 = vadd.f32 %v506, %v510
    %vm512 = vcmask 25600
    %513 = vst.msk [vmem:[#allocation2] sm:$0x3] %vm512, %v511
    // Predicated region
    $region10: #{tpu_custom_call.1} parent=1 // pred_check
      _
    $region11: #{tpu_custom_call.1} parent=1 // pred_check_branch
      %515 = sbr.rel (0) target = $region13
    $region12: #{tpu_custom_call.1} parent=1 // pred_region
      %s517 = ssub.s32 32, 32
      %518 = vsyncadd [#allocation3], %s517
      %s520 = sshll.u32 [#allocation2], 4
      %s521 = int_to_ptr.vmem [resolvable:$true] %s520
      %523 = dma.vmem_to_hbm [thread:$0]  %s521, 32, %s2, [#allocation3]
    $region13: #{tpu_custom_call.1} parent=1 // pred_fallthru
      _
    // Predicated region
    $region14: #{tpu_custom_call.1} parent=1 // pred_check
      _
    $region15: #{tpu_custom_call.1} parent=1 // pred_check_branch
      %525 = sbr.rel (0) target = $region17
    $region16: #{tpu_custom_call.1} parent=1 // pred_region
      %526 = dma.done [#allocation3], 32
    $region17: #{tpu_custom_call.1} parent=1 // pred_fallthru
      _
    %527 = vsyncpa [#allocation3], 1

</llo_original>
